<compile_context>
chip_gen: v5e
topology: v5e:2x2
jax: 0.10.0
libtpu: 0.0.40
codegen_flags: <defaults>
</compile_context>

<pallas_src>
import functools

import jax
import jax.numpy as jnp
from jax.experimental import pallas as pl
from jax.experimental.pallas import tpu as pltpu


def _round_up(v, m):
    return ((v + m - 1) // m) * m


def _mlp_kernel(x_ref, *refs, pre_relu_flags, compute_dtype):
    """Fused MLP forward on one batch tile.

    refs = (w_0, b_0, w_1, b_1, ..., o_ref).
    Weights are (in_pad, out_pad) in compute_dtype (resident in VMEM);
    biases are (1, out_pad) f32; all feature dims are padded to 128 multiples.
    """
    o_ref = refs[-1]
    param_refs = refs[:-1]
    num_layers = len(param_refs) // 2

    h = x_ref[...]                                    # (block_b, d0_pad) f32
    for i in range(num_layers):
        w = param_refs[2 * i][...]                    # (din_pad, dout_pad) compute_dtype
        b = param_refs[2 * i + 1][...]                # (1, dout_pad) f32
        if pre_relu_flags[i]:
            h = jnp.maximum(h, 0.0)
        acc = jnp.dot(h.astype(compute_dtype), w,
                      preferred_element_type=jnp.float32)   # MXU, f32 accumulate
        h = acc + b                                    # full-lane f32 VPU add
    o_ref[...] = h.astype(o_ref.dtype)


def mlp_forward(x, weights, biases, final_relu=False, *,
                compute_dtype=jnp.bfloat16, block_b=256):
    """Run the fused MLP Pallas kernel.

    x:       (B, d0) float32
    weights: list of (d_i, d_{i+1}) arrays (already transposed vs. torch)
    biases:  list of (d_{i+1},) arrays
    """
    num_layers = len(weights)
    final_relu_layer = num_layers if final_relu else num_layers - 1
    pre_relu_flags = tuple(i < final_relu_layer for i in range(num_layers))

    B, d0 = x.shape
    dims = [d0] + [w.shape[1] for w in weights]
    dims_pad = [_round_up(d, 128) for d in dims]       # lane-dense feature dims

    # Batch tile: multiple of 8 sublanes, capped so tiny batches stay 1 tile.
    block_b = min(block_b, _round_up(B, 8))
    B_pad = _round_up(B, block_b)

    # Host-side zero padding (pure layout plumbing; padded lanes stay exactly 0
    # because weight rows/cols AND biases are zero-padded, and ReLU(0)=0).
    x_pad = jnp.pad(x, ((0, B_pad - B), (0, dims_pad[0] - dims[0])))

    flat_params = []
    for i, (w, b) in enumerate(zip(weights, biases)):
        din, dout = dims[i], dims[i + 1]
        dinp, doutp = dims_pad[i], dims_pad[i + 1]
        w_pad = jnp.pad(w, ((0, dinp - din), (0, doutp - dout))).astype(compute_dtype)
        b_pad = jnp.pad(b.astype(jnp.float32), (0, doutp - dout)).reshape(1, doutp)
        flat_params.extend([w_pad, b_pad])

    grid = (B_pad // block_b,)

    # x / out stream per batch tile; weights & biases are constant-indexed so
    # they are DMA'd once and stay resident across the whole grid.
    in_specs = [pl.BlockSpec((block_b, dims_pad[0]), lambda i: (i, 0))]
    for p in flat_params:
        in_specs.append(pl.BlockSpec(p.shape, lambda i: (0, 0)))
    out_specs = pl.BlockSpec((block_b, dims_pad[-1]), lambda i: (i, 0))

    # VMEM budget estimate: double-buffered streamed tiles + resident params
    # + live activations.  Keep the request well under v7x's 64 MiB physical.
    def _nbytes(a):
        return a.size * a.dtype.itemsize
    param_bytes = sum(_nbytes(p) for p in flat_params)
    stream_bytes = block_b * (dims_pad[0] + dims_pad[-1]) * 4
    act_bytes = block_b * max(dims_pad) * 4 * 2
    est = 2 * stream_bytes + 2 * param_bytes + act_bytes
    vmem_limit = int(min(max(2 * est, 32 * 1024 * 1024), 56 * 1024 * 1024))

    flops = 2 * B_pad * sum(dims_pad[i] * dims_pad[i + 1] for i in range(num_layers))
    bytes_accessed = _nbytes(x_pad) + param_bytes + B_pad * dims_pad[-1] * 4

    kernel = functools.partial(_mlp_kernel,
                               pre_relu_flags=pre_relu_flags,
                               compute_dtype=compute_dtype)

    out_pad = pl.pallas_call(
        kernel,
        out_shape=jax.ShapeDtypeStruct((B_pad, dims_pad[-1]), x.dtype),
        grid=grid,
        in_specs=in_specs,
        out_specs=out_specs,
        compiler_params=pltpu.CompilerParams(
            dimension_semantics=("parallel",),
            vmem_limit_bytes=vmem_limit),
        cost_estimate=pl.CostEstimate(flops=flops, transcendentals=0,
                                      bytes_accessed=bytes_accessed),
    )(x_pad, *flat_params)

    return out_pad[:B, :dims[-1]]


def mlp_reference(x, weights, biases, final_relu=False, compute_dtype=None):
    """Pure-JAX reference mirroring the PyTorch module.

    If compute_dtype is given, matmul inputs are cast to it (f32 accumulate),
    matching the kernel's MXU precision.
    """
    num_layers = len(weights)
    final_relu_layer = num_layers if final_relu else num_layers - 1
    h = x.astype(jnp.float32)
    for i, (w, b) in enumerate(zip(weights, biases)):
        if i < final_relu_layer:
            h = jnp.maximum(h, 0.0)
        if compute_dtype is not None:
            acc = jnp.dot(h.astype(compute_dtype), w.astype(compute_dtype),
                          preferred_element_type=jnp.float32)
        else:
            acc = jnp.dot(h, w, preferred_element_type=jnp.float32)
        h = acc + b.astype(jnp.float32)
    return h.astype(x.dtype)


if __name__ == "__main__":
    # Small shapes consistent with the module: layer_sizes = [32, 64, 16]
    layer_sizes = [32, 64, 16]
    batch = 8
    final_relu = False

    key = jax.random.PRNGKey(0)
    kx, *kparams = jax.random.split(key, 1 + 2 * (len(layer_sizes) - 1))

    x = jax.random.normal(kx, (batch, layer_sizes[0]), dtype=jnp.float32)

    # Deterministic parameter init (torch.nn.Linear-style uniform bound).
    weights, biases = [], []
    for i in range(len(layer_sizes) - 1):
        fan_in, fan_out = layer_sizes[i], layer_sizes[i + 1]
        bound = 1.0 / (fan_in ** 0.5)
        kw, kb = kparams[2 * i], kparams[2 * i + 1]
        # stored as (in, out) == torch weight (out, in) transposed
        w = jax.random.uniform(kw, (fan_in, fan_out), jnp.float32, -bound, bound)
        b = jax.random.uniform(kb, (fan_out,), jnp.float32, -bound, bound)
        weights.append(w)
        biases.append(b)

    out = mlp_forward(x, weights, biases, final_relu=final_relu)
    out = jax.block_until_ready(out)
    assert out.shape == (batch, layer_sizes[-1])

    # Tight check vs a reference using the same bf16-input / f32-accumulate math.
    ref_bf16 = mlp_reference(x, weights, biases, final_relu,
                             compute_dtype=jnp.bfloat16)
    assert jnp.allclose(out, ref_bf16, atol=2e-3, rtol=2e-3), "mismatch vs bf16 ref"

    # Loose check vs the exact f32 module semantics (difference is only bf16
    # rounding of the MXU inputs; accumulation is f32).
    ref_f32 = mlp_reference(x, weights, biases, final_relu)
    assert jnp.allclose(out, ref_f32, atol=5e-2, rtol=5e-2), "mismatch vs f32 ref"

    print("KERNEL_OK")
</pallas_src>

<mosaic_0001>
module attributes {stable_mosaic.version = 11 : i64} {
  func.func @_mlp_kernel(%arg0: i32, %arg1: memref<8x128xf32, #tpu.memory_space<vmem>>, %arg2: memref<128x128xbf16, #tpu.memory_space<vmem>>, %arg3: memref<1x128xf32, #tpu.memory_space<vmem>>, %arg4: memref<128x128xbf16, #tpu.memory_space<vmem>>, %arg5: memref<1x128xf32, #tpu.memory_space<vmem>>, %arg6: memref<8x128xf32, #tpu.memory_space<vmem>>) attributes {dimension_semantics = [#tpu.dimension_semantics<parallel>], iteration_bounds = array<i64: 1>, scalar_prefetch = 0 : i64, scratch_operands = 0 : i64, tpu.core_type = #tpu.core_type<tc>, window_params = [{transform_indices = @transform_0, window_bounds = array<i64: 8, 128>}, {pipeline_mode = #tpu.pipeline_mode<synchronous>, transform_indices = @transform_1, window_bounds = array<i64: 128, 128>}, {pipeline_mode = #tpu.pipeline_mode<synchronous>, transform_indices = @transform_2, window_bounds = array<i64: 1, 128>}, {pipeline_mode = #tpu.pipeline_mode<synchronous>, transform_indices = @transform_3, window_bounds = array<i64: 128, 128>}, {pipeline_mode = #tpu.pipeline_mode<synchronous>, transform_indices = @transform_4, window_bounds = array<i64: 1, 128>}, {transform_indices = @transform_5, window_bounds = array<i64: 8, 128>}]} {
    %c0 = arith.constant 0 : index
    %c0_0 = arith.constant 0 : index
    %0 = vector.load %arg1[%c0, %c0_0] : memref<8x128xf32, #tpu.memory_space<vmem>>, vector<8x128xf32>
    %c0_1 = arith.constant 0 : index
    %c0_2 = arith.constant 0 : index
    %1 = vector.load %arg2[%c0_1, %c0_2] : memref<128x128xbf16, #tpu.memory_space<vmem>>, vector<128x128xbf16>
    %c0_3 = arith.constant 0 : index
    %c0_4 = arith.constant 0 : index
    %2 = vector.load %arg3[%c0_3, %c0_4] : memref<1x128xf32, #tpu.memory_space<vmem>>, vector<1x128xf32>
    %cst = arith.constant 0.000000e+00 : f32
    %3 = vector.broadcast %cst : f32 to vector<8x128xf32>
    %4 = arith.maximumf %0, %3 : vector<8x128xf32>
    %5 = arith.truncf %4 : vector<8x128xf32> to vector<8x128xbf16>
    %cst_5 = arith.constant dense<0.000000e+00> : vector<8x128xf32>
    %6 = tpu.matmul %5, %1, %cst_5 {dimension_numbers = #tpu.dot_dimension_numbers<[1], [0], [0], [1], [0, 0, 1, 1], [], []>} : vector<8x128xbf16>, vector<128x128xbf16>, vector<8x128xf32> -> vector<8x128xf32>
    %7 = vector.broadcast %2 : vector<1x128xf32> to vector<8x128xf32>
    %8 = arith.addf %6, %7 : vector<8x128xf32>
    %c0_6 = arith.constant 0 : index
    %c0_7 = arith.constant 0 : index
    %9 = vector.load %arg4[%c0_6, %c0_7] : memref<128x128xbf16, #tpu.memory_space<vmem>>, vector<128x128xbf16>
    %c0_8 = arith.constant 0 : index
    %c0_9 = arith.constant 0 : index
    %10 = vector.load %arg5[%c0_8, %c0_9] : memref<1x128xf32, #tpu.memory_space<vmem>>, vector<1x128xf32>
    %11 = arith.truncf %8 : vector<8x128xf32> to vector<8x128xbf16>
    %cst_10 = arith.constant dense<0.000000e+00> : vector<8x128xf32>
    %12 = tpu.matmul %11, %9, %cst_10 {dimension_numbers = #tpu.dot_dimension_numbers<[1], [0], [0], [1], [0, 0, 1, 1], [], []>} : vector<8x128xbf16>, vector<128x128xbf16>, vector<8x128xf32> -> vector<8x128xf32>
    %13 = vector.broadcast %10 : vector<1x128xf32> to vector<8x128xf32>
    %14 = arith.addf %12, %13 : vector<8x128xf32>
    %c0_11 = arith.constant 0 : index
    %c0_12 = arith.constant 0 : index
    %15 = vector.load %arg6[%c0_11, %c0_12] : memref<8x128xf32, #tpu.memory_space<vmem>>, vector<8x128xf32>
    tpu.vector_store %arg6[%c0_11, %c0_12], %14 {strides = array<i32>} : memref<8x128xf32, #tpu.memory_space<vmem>>, vector<8x128xf32>,
    return
  }
  func.func @transform_0(%arg0: i32) -> (i32, i32) {
    %c0_i32 = arith.constant 0 : i32
    %c0_i32_0 = arith.constant 0 : i32
    return %arg0, %c0_i32 : i32, i32
  }
  func.func @transform_1(%arg0: i32) -> (i32, i32) {
    %c0_i32 = arith.constant 0 : i32
    %c0_i32_0 = arith.constant 0 : i32
    %c0_i32_1 = arith.constant 0 : i32
    return %c0_i32, %c0_i32_0 : i32, i32
  }
  func.func @transform_2(%arg0: i32) -> (i32, i32) {
    %c0_i32 = arith.constant 0 : i32
    %c0_i32_0 = arith.constant 0 : i32
    %c0_i32_1 = arith.constant 0 : i32
    return %c0_i32, %c0_i32_0 : i32, i32
  }
  func.func @transform_3(%arg0: i32) -> (i32, i32) {
    %c0_i32 = arith.constant 0 : i32
    %c0_i32_0 = arith.constant 0 : i32
    %c0_i32_1 = arith.constant 0 : i32
    return %c0_i32, %c0_i32_0 : i32, i32
  }
  func.func @transform_4(%arg0: i32) -> (i32, i32) {
    %c0_i32 = arith.constant 0 : i32
    %c0_i32_0 = arith.constant 0 : i32
    %c0_i32_1 = arith.constant 0 : i32
    return %c0_i32, %c0_i32_0 : i32, i32
  }
  func.func @transform_5(%arg0: i32) -> (i32, i32) {
    %c0_i32 = arith.constant 0 : i32
    %c0_i32_0 = arith.constant 0 : i32
    return %arg0, %c0_i32 : i32, i32
  }
}

</mosaic_0001>

<llo_original>
// kernel: tpu_custom_call.1
$region0: #{tpu_custom_call.1}
  #allocation0 [shape = 'u32[]', space=smem, size = 0x4, offset = 0x4, fixed_abs, tag = 'smem constant byte address 0x4 - core index']
  #allocation1 [shape = 'u32[72,128]{1,0:T(1,128)}', space=vmem, size = 0x9000, scoped, tag = 'internal scratch']
  %s0 = inlined_call_operand.hbm [shape: f32[8,128], index: 0, kind: input, shape index: {}]
  %s1 = inlined_call_operand.hbm [shape: bf16[128,128], index: 1, kind: input, shape index: {}]
  %s2 = inlined_call_operand.vmem [shape: f32[1,128], index: 2, kind: input, shape index: {}]
  %s3 = inlined_call_operand.hbm [shape: bf16[128,128], index: 3, kind: input, shape index: {}]
  %s4 = inlined_call_operand.vmem [shape: f32[1,128], index: 4, kind: input, shape index: {}]
  %s5 = inlined_call_operand.hbm [shape: f32[8,128], index: 5, kind: output, shape index: {}]
  %s6 = sld [smem:[#allocation0]]
  $region42: #{tpu_custom_call.1} parent=0
    _
  %s8 = ssub.s32 1, %s6
  %s9 = scalar_select 0, %s8, %s6
  $region1: #{tpu_custom_call.1} parent=0
    #allocation2 [shape = 'u8[4096]{0}', space=vmem, size = 0x1000, scoped, tag = 'input window, operand 0, single buffered']
    #allocation3 [shape = 's32[1]{0}', space=sflag, size = 0x4, scoped, tag = 'scoped memory for tpu_custom_call.1']
    #allocation4 [shape = 's32[1]{0}', space=sflag, size = 0x4, scoped, tag = 'scoped memory for tpu_custom_call.1']
    #allocation5 [shape = 'u8[32768]{0}', space=vmem, size = 0x8000, scoped, tag = 'input window, operand 1, single buffered']
    #allocation6 [shape = 's32[1]{0}', space=sflag, size = 0x4, scoped, tag = 'scoped memory for tpu_custom_call.1']
    #allocation7 [shape = 'u8[32768]{0}', space=vmem, size = 0x8000, scoped, tag = 'input window, operand 3, single buffered']
    #allocation8 [shape = 'u8[4096]{0}', space=vmem, size = 0x1000, scoped, tag = 'output window, operand 0, single buffered']
    %10 = vsyncpa [#allocation3], 0
    %11 = vsyncpa [#allocation6], 0
    %12 = vsyncpa [#allocation4], 0
    // Predicated region
    $region2: #{tpu_custom_call.1} parent=1 // pred_check
      _
    $region3: #{tpu_custom_call.1} parent=1 // pred_check_branch
      %14 = sbr.rel (0) target = $region5
    $region4: #{tpu_custom_call.1} parent=1 // pred_region
      %16 = vsyncadd [#allocation3], 0
      %s18 = sshll.u32 %s0, 4
      %s19 = int_to_ptr.hbm [resolvable:$true] %s18
      %s20 = sshll.u32 [#allocation2], 4
      %s21 = int_to_ptr.vmem [resolvable:$true] %s20
      %23 = dma.hbm_to_vmem [thread:$0]  %s19, 128, %s21, [#allocation3]
    $region5: #{tpu_custom_call.1} parent=1 // pred_fallthru
      _
    // Predicated region
    $region6: #{tpu_custom_call.1} parent=1 // pred_check
      _
    $region7: #{tpu_custom_call.1} parent=1 // pred_check_branch
      %25 = sbr.rel (0) target = $region9
    $region8: #{tpu_custom_call.1} parent=1 // pred_region
      %27 = vsyncadd [#allocation6], 0
      %s28 = sshll.u32 %s1, 4
      %s29 = int_to_ptr.hbm [resolvable:$true] %s28
      %s30 = sshll.u32 [#allocation5], 4
      %s31 = int_to_ptr.vmem [resolvable:$true] %s30
      %36 = dma.hbm_to_vmem [thread:$0]  %s29, 1024, %s31, [#allocation6], 64, 64, 4
    $region9: #{tpu_custom_call.1} parent=1 // pred_fallthru
      _
    // Predicated region
    $region10: #{tpu_custom_call.1} parent=1 // pred_check
      _
    $region11: #{tpu_custom_call.1} parent=1 // pred_check_branch
      %38 = sbr.rel (0) target = $region13
    $region12: #{tpu_custom_call.1} parent=1 // pred_region
      _
    $region13: #{tpu_custom_call.1} parent=1 // pred_fallthru
      _
    // Predicated region
    $region14: #{tpu_custom_call.1} parent=1 // pred_check
      _
    $region15: #{tpu_custom_call.1} parent=1 // pred_check_branch
      %40 = sbr.rel (0) target = $region17
    $region16: #{tpu_custom_call.1} parent=1 // pred_region
      %42 = vsyncadd [#allocation6], 0
      %s43 = sshll.u32 %s3, 4
      %s44 = int_to_ptr.hbm [resolvable:$true] %s43
      %s45 = sshll.u32 [#allocation7], 4
      %s46 = int_to_ptr.vmem [resolvable:$true] %s45
      %51 = dma.hbm_to_vmem [thread:$0]  %s44, 1024, %s46, [#allocation6], 64, 64, 4
    $region17: #{tpu_custom_call.1} parent=1 // pred_fallthru
      _
    // Predicated region
    $region18: #{tpu_custom_call.1} parent=1 // pred_check
      _
    $region19: #{tpu_custom_call.1} parent=1 // pred_check_branch
      %53 = sbr.rel (0) target = $region21
    $region20: #{tpu_custom_call.1} parent=1 // pred_region
      _
    $region21: #{tpu_custom_call.1} parent=1 // pred_fallthru
      _
    // Predicated region
    $region22: #{tpu_custom_call.1} parent=1 // pred_check
      _
    $region23: #{tpu_custom_call.1} parent=1 // pred_check_branch
      %55 = sbr.rel (0) target = $region25
    $region24: #{tpu_custom_call.1} parent=1 // pred_region
      %57 = dma.done [#allocation3], 128
    $region25: #{tpu_custom_call.1} parent=1 // pred_fallthru
      _
    // Predicated region
    $region26: #{tpu_custom_call.1} parent=1 // pred_check
      _
    $region27: #{tpu_custom_call.1} parent=1 // pred_check_branch
      %59 = sbr.rel (0) target = $region29
    $region28: #{tpu_custom_call.1} parent=1 // pred_region
      %61 = dma.done [#allocation6], 1024
    $region29: #{tpu_custom_call.1} parent=1 // pred_fallthru
      _
    // Predicated region
    $region30: #{tpu_custom_call.1} parent=1 // pred_check
      _
    $region31: #{tpu_custom_call.1} parent=1 // pred_check_branch
      %63 = sbr.rel (0) target = $region33
    $region32: #{tpu_custom_call.1} parent=1 // pred_region
      %65 = dma.done [#allocation6], 1024
    $region33: #{tpu_custom_call.1} parent=1 // pred_fallthru
      _
    %v66 = vld [vmem:[#allocation2] sm:$0xff]
    %v67 = vld [vmem:[#allocation5] sm:$0xf]
    %v68 = vld [vmem:[#allocation5 + $0x4] sm:$0xf]
    %v69 = vld [vmem:[#allocation5 + $0x8] sm:$0xf]
    %v70 = vld [vmem:[#allocation5 + $0xc] sm:$0xf]
    %v71 = vld [vmem:[#allocation5 + $0x10] sm:$0xf]
    %v72 = vld [vmem:[#allocation5 + $0x14] sm:$0xf]
    %v73 = vld [vmem:[#allocation5 + $0x18] sm:$0xf]
    %v74 = vld [vmem:[#allocation5 + $0x1c] sm:$0xf]
    %v75 = vld [vmem:[#allocation5 + $0x20] sm:$0xf]
    %v76 = vld [vmem:[#allocation5 + $0x24] sm:$0xf]
    %v77 = vld [vmem:[#allocation5 + $0x28] sm:$0xf]
    %v78 = vld [vmem:[#allocation5 + $0x2c] sm:$0xf]
    %v79 = vld [vmem:[#allocation5 + $0x30] sm:$0xf]
    %v80 = vld [vmem:[#allocation5 + $0x34] sm:$0xf]
    %v81 = vld [vmem:[#allocation5 + $0x38] sm:$0xf]
    %v82 = vld [vmem:[#allocation5 + $0x3c] sm:$0xf]
    %v83 = vld [vmem:[%s2] sm:$0x1]
    %v84 = vmax.f32 %v66, 0.0
    %v85 = vpack.c.bf16 %v84, %v84
    %v87 = vperm.slane %v83, 0
    %v105 = vunpack.c.l.b16 %v67
    %v106 = vunpack.c.l.b16 %v68
    %v107 = vunpack.c.l.b16 %v69
    %v108 = vunpack.c.l.b16 %v70
    %v109 = vunpack.c.l.b16 %v71
    %v110 = vunpack.c.l.b16 %v72
    %v111 = vunpack.c.l.b16 %v73
    %v112 = vunpack.c.l.b16 %v74
    %v113 = vunpack.c.l.b16 %v75
    %v114 = vunpack.c.l.b16 %v76
    %v115 = vunpack.c.l.b16 %v77
    %v116 = vunpack.c.l.b16 %v78
    %v117 = vunpack.c.l.b16 %v79
    %v118 = vunpack.c.l.b16 %v80
    %v119 = vunpack.c.l.b16 %v81
    %v120 = vunpack.c.l.b16 %v82
    %v121 = vpack.c.b16 %v106, %v105
    %v122 = vpack.c.b16 %v108, %v107
    %v123 = vpack.c.b16 %v110, %v109
    %v124 = vpack.c.b16 %v112, %v111
    %v125 = vpack.c.b16 %v114, %v113
    %v126 = vpack.c.b16 %v116, %v115
    %v127 = vpack.c.b16 %v118, %v117
    %v128 = vpack.c.b16 %v120, %v119
    %137 = vmatpush.bf16.msra.mxu0 %v128
    %138 = vmatpush.bf16.msra.mxu0 %v127
    %139 = vmatpush.bf16.msra.mxu0 %v126
    %140 = vmatpush.bf16.msra.mxu0 %v125
    %141 = vmatpush.bf16.msra.mxu0 %v124
    %142 = vmatpush.bf16.msra.mxu0 %v123
    %143 = vmatpush.bf16.msra.mxu0 %v122
    %144 = vmatpush.bf16.msra.mxu0 %v121
    %145 = vmatmul.bf16.gmra.mxu0 %v85
    %v146 = vpop.f32.mrf.mxu0
    %v147 = vadd.f32 %v87, %v146
    %v148 = vpop.f32.mrf.mxu0
    %149 = vdwg.mxu0
    %v150 = vld [vmem:[#allocation7] sm:$0xf]
    %v151 = vld [vmem:[#allocation7 + $0x4] sm:$0xf]
    %v152 = vld [vmem:[#allocation7 + $0x8] sm:$0xf]
    %v153 = vld [vmem:[#allocation7 + $0xc] sm:$0xf]
    %v154 = vld [vmem:[#allocation7 + $0x10] sm:$0xf]
    %v155 = vld [vmem:[#allocation7 + $0x14] sm:$0xf]
    %v156 = vld [vmem:[#allocation7 + $0x18] sm:$0xf]
    %v157 = vld [vmem:[#allocation7 + $0x1c] sm:$0xf]
    %v158 = vld [vmem:[#allocation7 + $0x20] sm:$0xf]
    %v159 = vld [vmem:[#allocation7 + $0x24] sm:$0xf]
    %v160 = vld [vmem:[#allocation7 + $0x28] sm:$0xf]
    %v161 = vld [vmem:[#allocation7 + $0x2c] sm:$0xf]
    %v162 = vld [vmem:[#allocation7 + $0x30] sm:$0xf]
    %v163 = vld [vmem:[#allocation7 + $0x34] sm:$0xf]
    %v164 = vld [vmem:[#allocation7 + $0x38] sm:$0xf]
    %v165 = vld [vmem:[#allocation7 + $0x3c] sm:$0xf]
    %v166 = vld [vmem:[%s4] sm:$0x1]
    %v167 = vpack.c.bf16 %v147, %v147
    %v169 = vperm.slane %v166, 0
    %v187 = vunpack.c.l.b16 %v150
    %v188 = vunpack.c.l.b16 %v151
    %v189 = vunpack.c.l.b16 %v152
    %v190 = vunpack.c.l.b16 %v153
    %v191 = vunpack.c.l.b16 %v154
    %v192 = vunpack.c.l.b16 %v155
    %v193 = vunpack.c.l.b16 %v156
    %v194 = vunpack.c.l.b16 %v157
    %v195 = vunpack.c.l.b16 %v158
    %v196 = vunpack.c.l.b16 %v159
    %v197 = vunpack.c.l.b16 %v160
    %v198 = vunpack.c.l.b16 %v161
    %v199 = vunpack.c.l.b16 %v162
    %v200 = vunpack.c.l.b16 %v163
    %v201 = vunpack.c.l.b16 %v164
    %v202 = vunpack.c.l.b16 %v165
    %v203 = vpack.c.b16 %v188, %v187
    %v204 = vpack.c.b16 %v190, %v189
    %v205 = vpack.c.b16 %v192, %v191
    %v206 = vpack.c.b16 %v194, %v193
    %v207 = vpack.c.b16 %v196, %v195
    %v208 = vpack.c.b16 %v198, %v197
    %v209 = vpack.c.b16 %v200, %v199
    %v210 = vpack.c.b16 %v202, %v201
    %219 = vmatpush.bf16.msra.mxu0 %v210
    %220 = vmatpush.bf16.msra.mxu0 %v209
    %221 = vmatpush.bf16.msra.mxu0 %v208
    %222 = vmatpush.bf16.msra.mxu0 %v207
    %223 = vmatpush.bf16.msra.mxu0 %v206
    %224 = vmatpush.bf16.msra.mxu0 %v205
    %225 = vmatpush.bf16.msra.mxu0 %v204
    %226 = vmatpush.bf16.msra.mxu0 %v203
    %227 = vmatmul.bf16.gmra.mxu0 %v167
    %v228 = vpop.f32.mrf.mxu0
    %v229 = vadd.f32 %v169, %v228
    %v230 = vpop.f32.mrf.mxu0
    %231 = vdwg.mxu0
    %232 = vst [vmem:[#allocation8] sm:$0xff] %v229
    // Predicated region
    $region34: #{tpu_custom_call.1} parent=1 // pred_check
      _
    $region35: #{tpu_custom_call.1} parent=1 // pred_check_branch
      %234 = sbr.rel (0) target = $region37
    $region36: #{tpu_custom_call.1} parent=1 // pred_region
      %236 = vsyncadd [#allocation4], 0
      %s238 = sshll.u32 [#allocation8], 4
      %s239 = int_to_ptr.vmem [resolvable:$true] %s238
      %s240 = sshll.u32 %s5, 4
      %s241 = int_to_ptr.hbm [resolvable:$true] %s240
      %243 = dma.vmem_to_hbm [thread:$0]  %s239, 128, %s241, [#allocation4]
    $region37: #{tpu_custom_call.1} parent=1 // pred_fallthru
      _
    // Predicated region
    $region38: #{tpu_custom_call.1} parent=1 // pred_check
      _
    $region39: #{tpu_custom_call.1} parent=1 // pred_check_branch
      %245 = sbr.rel (0) target = $region41
    $region40: #{tpu_custom_call.1} parent=1 // pred_region
      %247 = dma.done [#allocation4], 128
    $region41: #{tpu_custom_call.1} parent=1 // pred_fallthru
      _
    %248 = vsyncpa [#allocation3], 1
    %249 = vsyncpa [#allocation6], 1
    %250 = vsyncpa [#allocation4], 1

</llo_original>
